<compile_context>
chip_gen: v7x
topology: tpu7x:2x2x1
jax: 0.10.0
libtpu: 0.0.40
codegen_flags: <defaults>
</compile_context>

<pallas_src>
import functools

import jax
import jax.numpy as jnp
from jax.experimental import pallas as pl
from jax.experimental.pallas import tpu as pltpu

_LANES = 128
_SMALL_BYTES = 1 << 20             # per-input threshold for single-block path
_TILE_TARGET_BYTES = 4 << 20       # ~4 MiB tile per buffer on the tiled path


def _make_sub_kernel(n_inputs: int):
    """Elementwise subtract kernel over n_inputs refs -> 1 out ref."""

    def kernel(*refs):
        in_refs = refs[:n_inputs]
        out_ref = refs[n_inputs]
        acc = in_refs[0][...]
        for r in in_refs[1:]:
            acc = acc - r[...]
        out_ref[...] = acc

    return kernel


def _sublane_multiple(dtype) -> int:
    # (8,128) tiles for 4-byte, (16,128) for 2-byte, (32,128) for 1-byte dtypes.
    itemsize = jnp.dtype(dtype).itemsize
    return max(8, 32 // max(1, itemsize))


def _round_up(x: int, m: int) -> int:
    return ((x + m - 1) // m) * m


def _cdiv(a: int, b: int) -> int:
    return -(-a // b)


@functools.lru_cache(maxsize=1)
def _vmem_capacity_bytes() -> int:
    """Physical VMEM of the current generation (conservative fallback)."""
    try:
        return int(pltpu.get_tpu_info().vmem_capacity_bytes)
    except Exception:
        return 64 << 20  # assume v7x-class (smallest) if the query fails


@functools.partial(jax.jit, static_argnames=("inplace",))
def eltwise_sub(*inputs, inplace: bool = False):
    """res = inputs[0] - inputs[1] - ... - inputs[-1], elementwise.

    All inputs must share shape and dtype (no broadcasting, matching the
    PyTorch module's typical use on identically shaped feature maps).

    Note: inplace=True only aliases the in-kernel buffers (input 0 <-> output);
    caller-level donation additionally requires jit donate_argnums.
    """
    assert len(inputs) >= 1
    x0 = inputs[0]
    shape = x0.shape
    dtype = x0.dtype
    for t in inputs[1:]:
        assert t.shape == shape and t.dtype == dtype

    n = len(inputs)
    if n == 1:
        return x0

    itemsize = jnp.dtype(dtype).itemsize
    total = 1
    for d in shape:
        total *= d

    io_alias = {0: 0} if inplace else {}
    kernel = _make_sub_kernel(n)
    sub_mult = _sublane_multiple(dtype)

    # ---------------- small-input fast path: one block, no grid -------------
    if total * itemsize <= _SMALL_BYTES:
        pad_tail = 0
        if total % _LANES == 0:
            small_shape = (total // _LANES, _LANES)
            flats = [t.reshape(small_shape) for t in inputs]
        else:
            # Sublane/lane-dense layout: pad (< sub_mult*128 elems) and slice
            # the tail off afterwards; trivially cheap for <= 1 MiB tensors.
            padded = _round_up(total, sub_mult * _LANES)
            pad_tail = padded - total
            small_shape = (padded // _LANES, _LANES)
            flats = [
                jnp.pad(t.reshape(-1), (0, pad_tail)).reshape(small_shape)
                for t in inputs
            ]

        block_bytes = small_shape[0] * _LANES * itemsize
        vmem_limit = int(min(max((n + 1) * block_bytes + (8 << 20), 32 << 20),
                             48 << 20))

        spec = pl.BlockSpec(memory_space=pltpu.MemorySpace.VMEM)
        out = pl.pallas_call(
            kernel,
            out_shape=jax.ShapeDtypeStruct(small_shape, dtype),
            in_specs=[spec] * n,
            out_specs=spec,
            input_output_aliases=io_alias,
            compiler_params=pltpu.CompilerParams(vmem_limit_bytes=vmem_limit),
        )(*flats)
        out = out.reshape(-1)
        if pad_tail:
            out = out[:total]
        return out.reshape(shape)

    # ---------------- large-input tiled path --------------------------------
    # Pick a 2D layout.  Preferred: fully lane-dense (total//128, 128).  If the
    # total is not a 128 multiple, use the natural (lead, last_dim) collapse
    # (free reshape, ragged lanes masked by Pallas) to avoid extra HBM passes.
    rem = total % _LANES
    padded_tail = 0
    if rem == 0:
        rows2, cols2 = total // _LANES, _LANES
        flats = [t.reshape(rows2, cols2) for t in inputs]
    else:
        cols2 = shape[-1] if len(shape) >= 2 else 0
        lead = (total // cols2) if cols2 else 0
        if (cols2
                and lead >= 2 * sub_mult
                and sub_mult * cols2 * itemsize <= _TILE_TARGET_BYTES):
            rows2 = lead
            flats = [t.reshape(rows2, cols2) for t in inputs]
        else:
            # TODO(synk): rare fallback (e.g. odd-length 1-D tensors) pads to a
            # 128-lane multiple -> one extra HBM pass over inputs and output.
            padded = _round_up(total, _LANES)
            padded_tail = padded - total
            rows2, cols2 = padded // _LANES, _LANES
            flats = [
                jnp.pad(t.reshape(-1), (0, padded_tail)).reshape(rows2, cols2)
                for t in inputs
            ]

    n_bufs = n + 1  # n inputs + 1 output, each double-buffered by the pipeline
    row_bytes = cols2 * itemsize

    # Generation-aware VMEM budget: v7x has 64 MiB physical, v5e/v6e 128 MiB.
    vmem_cap = _vmem_capacity_bytes()
    if vmem_cap <= (64 << 20):
        tile_budget_total = 44 << 20   # cap on n_bufs * 2 * tile_bytes
        vmem_limit_cap = 56 << 20      # leave ~8 MiB for compiler scratch
    else:
        tile_budget_total = 80 << 20
        vmem_limit_cap = 96 << 20

    target_rows = max(sub_mult, _TILE_TARGET_BYTES // row_bytes)
    budget_rows = max(sub_mult, tile_budget_total // (n_bufs * 2 * row_bytes))
    block_rows = max(sub_mult, min(target_rows, budget_rows, rows2))
    block_rows = (block_rows // sub_mult) * sub_mult

    # Balance onto an even number of grid steps (>= 2) so v7x's two TensorCores
    # split the work evenly; a no-op concern on v5e/v6e.  The rebalanced
    # block_rows never exceeds the budget-derived one.
    steps = _cdiv(rows2, block_rows)
    even_steps = max(2, 2 * _cdiv(steps, 2))
    block_rows = max(sub_mult, _round_up(_cdiv(rows2, even_steps), sub_mult))

    grid = (pl.cdiv(rows2, block_rows),)
    spec = pl.BlockSpec((block_rows, cols2), lambda i: (i, 0))

    tile_bytes = block_rows * cols2 * itemsize
    vmem_limit = int(min(max(n_bufs * 2 * tile_bytes + (8 << 20), 32 << 20),
                         vmem_limit_cap))

    cost = pl.CostEstimate(
        flops=(n - 1) * total,
        transcendentals=0,
        bytes_accessed=(n + 1) * total * itemsize,
    )

    out = pl.pallas_call(
        kernel,
        out_shape=jax.ShapeDtypeStruct((rows2, cols2), dtype),
        grid_spec=pltpu.PrefetchScalarGridSpec(
            num_scalar_prefetch=0,
            grid=grid,
            in_specs=[spec] * n,
            out_specs=spec,
        ),
        compiler_params=pltpu.CompilerParams(
            dimension_semantics=("parallel",),
            vmem_limit_bytes=vmem_limit,
        ),
        input_output_aliases=io_alias,
        cost_estimate=cost,
    )(*flats)

    if padded_tail:
        out = out.reshape(-1)[:total]
    return out.reshape(shape)


if __name__ == "__main__":
    key = jax.random.PRNGKey(0)
    k1, k2, k3, k4, k5, k6, k7, k8 = jax.random.split(key, 8)

    # --- small NCHW feature maps (exercises the single-block path) ---------
    shape_s = (2, 4, 16, 16)
    a = jax.random.normal(k1, shape_s, dtype=jnp.float32)
    b = jax.random.normal(k2, shape_s, dtype=jnp.float32)
    c = jax.random.normal(k3, shape_s, dtype=jnp.float32)
    ref_s = a - b - c

    res_s = jax.block_until_ready(eltwise_sub(a, b, c))
    assert res_s.shape == shape_s
    assert jnp.allclose(res_s, ref_s, atol=1e-6), "small-path mismatch"

    # inplace=True semantics (output aliases input[0]'s in-kernel buffer)
    res_ip = jax.block_until_ready(eltwise_sub(a, b, c, inplace=True))
    assert jnp.allclose(res_ip, ref_s, atol=1e-6), "inplace-path mismatch"

    # --- larger feature maps (exercises the tiled, lane-dense path) --------
    shape_l = (4, 32, 56, 56)
    x = jax.random.normal(k4, shape_l, dtype=jnp.float32)
    y = jax.random.normal(k5, shape_l, dtype=jnp.float32)
    z = jax.random.normal(k6, shape_l, dtype=jnp.float32)
    ref_l = x - y - z

    res_l = jax.block_until_ready(eltwise_sub(x, y, z))
    assert res_l.shape == shape_l
    assert jnp.allclose(res_l, ref_l, atol=1e-5), "tiled-path mismatch"

    # --- ragged total (total % 128 != 0): natural-collapse tiled path -------
    shape_r = (3000, 100)
    p = jax.random.normal(k7, shape_r, dtype=jnp.float32)
    q = jax.random.normal(k8, shape_r, dtype=jnp.float32)
    ref_r = p - q

    res_r = jax.block_until_ready(eltwise_sub(p, q))
    assert res_r.shape == shape_r
    assert jnp.allclose(res_r, ref_r, atol=1e-6), "ragged-path mismatch"

    print("KERNEL_OK")
</pallas_src>

<mosaic_0001>
module attributes {stable_mosaic.version = 11 : i64} {
  func.func @kernel(%arg0: memref<16x128xf32, #tpu.memory_space<vmem>>, %arg1: memref<16x128xf32, #tpu.memory_space<vmem>>, %arg2: memref<16x128xf32, #tpu.memory_space<vmem>>, %arg3: memref<16x128xf32, #tpu.memory_space<vmem>>) attributes {dimension_semantics = [], scalar_prefetch = 0 : i64, scratch_operands = 0 : i64, tpu.core_type = #tpu.core_type<tc>} {
    %c0 = arith.constant 0 : index
    %c0_0 = arith.constant 0 : index
    %0 = vector.load %arg0[%c0, %c0_0] : memref<16x128xf32, #tpu.memory_space<vmem>>, vector<16x128xf32>
    %c0_1 = arith.constant 0 : index
    %c0_2 = arith.constant 0 : index
    %1 = vector.load %arg1[%c0_1, %c0_2] : memref<16x128xf32, #tpu.memory_space<vmem>>, vector<16x128xf32>
    %2 = arith.subf %0, %1 : vector<16x128xf32>
    %c0_3 = arith.constant 0 : index
    %c0_4 = arith.constant 0 : index
    %3 = vector.load %arg2[%c0_3, %c0_4] : memref<16x128xf32, #tpu.memory_space<vmem>>, vector<16x128xf32>
    %4 = arith.subf %2, %3 : vector<16x128xf32>
    %c0_5 = arith.constant 0 : index
    %c0_6 = arith.constant 0 : index
    %5 = vector.load %arg3[%c0_5, %c0_6] : memref<16x128xf32, #tpu.memory_space<vmem>>, vector<16x128xf32>
    tpu.vector_store %arg3[%c0_5, %c0_6], %4 {strides = array<i32>} : memref<16x128xf32, #tpu.memory_space<vmem>>, vector<16x128xf32>,
    return
  }
}

</mosaic_0001>

<llo_original>
// kernel: eltwise_sub.1
$region0: #{eltwise_sub.1}
  #allocation0 [shape = 'u32[]', space=smem, size = 0x4, offset = 0x4, fixed_abs, tag = 'smem constant byte address 0x4 - core index']
  #allocation1 [shape = 'u32[144,128]{1,0:T(1,128)}', space=vmem, size = 0x12000, scoped, tag = 'internal scratch']
  %s0 = inlined_call_operand.vmem [shape: f32[16,128], index: 0, kind: input, shape index: {}]
  %s1 = inlined_call_operand.vmem [shape: f32[16,128], index: 1, kind: input, shape index: {}]
  %s2 = inlined_call_operand.vmem [shape: f32[16,128], index: 2, kind: input, shape index: {}]
  %s3 = inlined_call_operand.vmem [shape: f32[16,128], index: 3, kind: output, shape index: {}]
  %s4 = sld [smem:[#allocation0]]
  $region22: #{eltwise_sub.1} parent=0
    _
  %s6 = ssub.s32 1, %s4
  %s7 = scalar_select 0, %s6, %s4
  // Predicated region
  $region2: #{eltwise_sub.1} parent=0 // pred_check
    _
  $region3: #{eltwise_sub.1} parent=0 // pred_check_branch
    %9 = sbr.rel (0) target = $region5
  $region4: #{eltwise_sub.1} parent=0 // pred_region
    _
  $region5: #{eltwise_sub.1} parent=0 // pred_fallthru
    _
  // Predicated region
  $region6: #{eltwise_sub.1} parent=0 // pred_check
    _
  $region7: #{eltwise_sub.1} parent=0 // pred_check_branch
    %11 = sbr.rel (0) target = $region9
  $region8: #{eltwise_sub.1} parent=0 // pred_region
    _
  $region9: #{eltwise_sub.1} parent=0 // pred_fallthru
    _
  // Predicated region
  $region10: #{eltwise_sub.1} parent=0 // pred_check
    _
  $region11: #{eltwise_sub.1} parent=0 // pred_check_branch
    %13 = sbr.rel (0) target = $region13
  $region12: #{eltwise_sub.1} parent=0 // pred_region
    _
  $region13: #{eltwise_sub.1} parent=0 // pred_fallthru
    _
  %v14 = vld [vmem:[%s0] sm:$0xff]
  %v15 = vld [vmem:[%s0 + $0x8] sm:$0xff]
  %v16 = vld [vmem:[%s1] sm:$0xff]
  %v17 = vld [vmem:[%s1 + $0x8] sm:$0xff]
  %v18 = vsub.f32 %v14, %v16
  %v19 = vsub.f32 %v15, %v17
  %v20 = vld [vmem:[%s2] sm:$0xff]
  %v21 = vld [vmem:[%s2 + $0x8] sm:$0xff]
  %v22 = vsub.f32 %v18, %v20
  %v23 = vsub.f32 %v19, %v21
  %24 = vst [vmem:[%s3] sm:$0xff] %v22
  %25 = vst [vmem:[%s3 + $0x8] sm:$0xff] %v23
  // Predicated region
  $region14: #{eltwise_sub.1} parent=0 // pred_check
    _
  $region15: #{eltwise_sub.1} parent=0 // pred_check_branch
    %27 = sbr.rel (0) target = $region17
  $region16: #{eltwise_sub.1} parent=0 // pred_region
    _
  $region17: #{eltwise_sub.1} parent=0 // pred_fallthru
    _
  // Predicated region
  $region18: #{eltwise_sub.1} parent=0 // pred_check
    _
  $region19: #{eltwise_sub.1} parent=0 // pred_check_branch
    %29 = sbr.rel (0) target = $region21
  $region20: #{eltwise_sub.1} parent=0 // pred_region
    _
  $region21: #{eltwise_sub.1} parent=0 // pred_fallthru
    _

</llo_original>
